<compile_context>
chip_gen: v7x
topology: tpu7x:2x2x1
jax: 0.10.0
libtpu: 0.0.40
codegen_flags: <defaults>
</compile_context>

<pallas_src>
import math
import jax
import jax.numpy as jnp
from jax.experimental import pallas as pl
from jax.experimental.pallas import tpu as pltpu


# ------------------------------ Pallas kernel --------------------------------

def _copy_kernel(x_ref, o_ref):
    # One VMEM tile of the flattened activation: straight lane-dense copy.
    o_ref[...] = x_ref[...]


# ------------------------------ tiling helpers --------------------------------

_LANE = 128
_TARGET_BLOCK_BYTES = 4 * 1024 * 1024    # ~4 MiB blocks: roofline sweet spot, v7x-safe
_MAX_COL_TILE = 4096                     # lane-axis cap (elements), multiple of 128
_VMEM_LIMIT_BYTES = 32 * 1024 * 1024     # covers 2 operands x 2 pipeline bufs x 4 MiB + headroom
_MIN_SPLIT_BYTES = 1 * 1024 * 1024       # force >=2 parallel blocks above this (v7x dual-TC)


def _round_down(x, m):
    return (x // m) * m


def _sublane_multiple(dtype):
    """Sublane packing for the dtype: 8 (f32), 16 (bf16), 32 (int8)."""
    itemsize = jnp.dtype(dtype).itemsize
    return max(8, 32 // max(itemsize, 1))


def _pick_slab_cols(total, sub):
    """A lane-dense slab width C (multiple of 128, C | total), preferring >= `sub` rows.

    Returns 0 when no such width exists (total not a multiple of 128)."""
    if total < _LANE or total % _LANE != 0:
        return 0
    for upper in (min(_MAX_COL_TILE, total // max(sub, 1)), min(_MAX_COL_TILE, total)):
        c = _round_down(upper, _LANE)
        while c >= _LANE:
            if total % c == 0:
                return c
            c -= _LANE
    return 0


def _tile_2d(rows, cols, dtype):
    """Pick (row_tile, col_tile) for a 2-D copy of (rows, cols)."""
    itemsize = jnp.dtype(dtype).itemsize
    sub = _sublane_multiple(dtype)

    # Lane tile: full extent when it fits under the cap, otherwise the cap
    # (a multiple of 128); the remainder is a partial, masked last block only.
    tc = cols if cols <= _MAX_COL_TILE else _MAX_COL_TILE

    # Row tile: fill up to the block-byte budget, as a multiple of the sublane
    # packing when the block is not the full row extent.
    budget_rows = max(sub, _TARGET_BLOCK_BYTES // max(tc * itemsize, 1))
    tr = min(rows, budget_rows)
    if tr < rows:
        tr = max(sub, _round_down(tr, sub))

    # Guarantee >= 2 blocks along a 'parallel' axis for larger inputs so both
    # v7x TensorCores drive DMA engines on this bandwidth-bound copy.
    total_bytes = rows * cols * itemsize
    if (total_bytes > _MIN_SPLIT_BYTES
            and pl.cdiv(rows, tr) < 2 and pl.cdiv(cols, tc) < 2):
        half = max(sub, _round_down((rows + 1) // 2, sub))
        if half < rows:
            tr = half
    return tr, tc


# ------------------------------ forward ---------------------------------------

def view_forward(x, *, materialize=True):
    """Equivalent of torch `x.view(x.size(0), -1)`."""
    assert x.ndim >= 2, "View expects a batch dim plus at least one more dim"
    b = x.shape[0]
    f = int(math.prod(x.shape[1:]))
    out_shape = (b, f)

    if not materialize:
        # Zero-copy fast path: .view is metadata-only; so is XLA's reshape of a
        # contiguous operand.  No HBM traffic at all.
        return jnp.reshape(x, out_shape)

    total = b * f
    sub = _sublane_multiple(x.dtype)

    # Choose the copy layout.  A small batch (b < sublane pack) or a non-128
    # feature size wastes vreg/VMEM tiles and forces masked stores in the
    # natural (b, f) layout, so when the element count permits we re-view the
    # contiguous buffer as a dense (rows, C) slab, copy that, and view back.
    slab_cols = _pick_slab_cols(total, sub)
    use_slab = slab_cols > 0 and (b < sub or f < _LANE or f % _LANE != 0)

    if use_slab:
        rows, cols = total // slab_cols, slab_cols
    else:
        rows, cols = b, f

    x2 = jnp.reshape(x, (rows, cols))            # metadata-only
    tr, tc = _tile_2d(rows, cols, x.dtype)
    grid = (pl.cdiv(rows, tr), pl.cdiv(cols, tc))

    y2 = pl.pallas_call(
        _copy_kernel,
        out_shape=jax.ShapeDtypeStruct((rows, cols), x.dtype),
        grid=grid,
        in_specs=[pl.BlockSpec((tr, tc), lambda i, j: (i, j))],
        out_specs=pl.BlockSpec((tr, tc), lambda i, j: (i, j)),
        compiler_params=pltpu.CompilerParams(
            dimension_semantics=("parallel", "parallel"),
            vmem_limit_bytes=_VMEM_LIMIT_BYTES),
    )(x2)

    return jnp.reshape(y2, out_shape)            # metadata-only


if __name__ == "__main__":
    key = jax.random.PRNGKey(0)
    # Small shapes consistent with the module: batch=2, channels=4, spatial=16.
    x = jax.random.normal(key, (2, 4, 16, 16), dtype=jnp.float32)

    y = jax.jit(view_forward)(x)
    y = jax.block_until_ready(y)

    expected = x.reshape(x.shape[0], -1)         # reference flatten
    assert y.shape == (2, 4 * 16 * 16) and y.dtype == x.dtype
    assert jnp.array_equal(y, expected)
    print("KERNEL_OK")
</pallas_src>

<mosaic_0001>
module attributes {stable_mosaic.version = 11 : i64} {
  func.func @_copy_kernel(%arg0: i32, %arg1: i32, %arg2: memref<8x256xf32, #tpu.memory_space<vmem>>, %arg3: memref<8x256xf32, #tpu.memory_space<vmem>>) attributes {dimension_semantics = [#tpu.dimension_semantics<parallel>, #tpu.dimension_semantics<parallel>], iteration_bounds = array<i64: 1, 1>, scalar_prefetch = 0 : i64, scratch_operands = 0 : i64, tpu.core_type = #tpu.core_type<tc>, window_params = [{transform_indices = @transform_0, window_bounds = array<i64: 8, 256>}, {transform_indices = @transform_1, window_bounds = array<i64: 8, 256>}]} {
    %c0 = arith.constant 0 : index
    %c0_0 = arith.constant 0 : index
    %0 = vector.load %arg2[%c0, %c0_0] : memref<8x256xf32, #tpu.memory_space<vmem>>, vector<8x256xf32>
    %c0_1 = arith.constant 0 : index
    %c0_2 = arith.constant 0 : index
    %1 = vector.load %arg3[%c0_1, %c0_2] : memref<8x256xf32, #tpu.memory_space<vmem>>, vector<8x256xf32>
    tpu.vector_store %arg3[%c0_1, %c0_2], %0 {strides = array<i32>} : memref<8x256xf32, #tpu.memory_space<vmem>>, vector<8x256xf32>,
    return
  }
  func.func @transform_0(%arg0: i32, %arg1: i32) -> (i32, i32) {
    %c0_i32 = arith.constant 0 : i32
    return %arg0, %arg1 : i32, i32
  }
  func.func @transform_1(%arg0: i32, %arg1: i32) -> (i32, i32) {
    %c0_i32 = arith.constant 0 : i32
    return %arg0, %arg1 : i32, i32
  }
}

</mosaic_0001>

<llo_original>
// kernel: view_forward.1
$region0: #{view_forward.1}
  #allocation0 [shape = 'u32[]', space=smem, size = 0x4, offset = 0x4, fixed_abs, tag = 'smem constant byte address 0x4 - core index']
  #allocation1 [shape = 'u32[144,128]{1,0:T(1,128)}', space=vmem, size = 0x12000, scoped, tag = 'internal scratch']
  %s0 = inlined_call_operand.vmem [shape: f32[8,256], index: 0, kind: input, shape index: {}]
  %s1 = inlined_call_operand.vmem [shape: f32[8,256], index: 1, kind: output, shape index: {}]
  %s2 = sld [smem:[#allocation0]]
  $region14: #{view_forward.1} parent=0
    _
  %s4 = ssub.s32 1, %s2
  %s5 = scalar_select 0, %s4, %s2
  // Predicated region
  $region2: #{view_forward.1} parent=0 // pred_check
    _
  $region3: #{view_forward.1} parent=0 // pred_check_branch
    %7 = sbr.rel (0) target = $region5
  $region4: #{view_forward.1} parent=0 // pred_region
    _
  $region5: #{view_forward.1} parent=0 // pred_fallthru
    _
  %v8 = vld [vmem:[%s0] sm:$0xff]
  %v9 = vld [vmem:[%s0 + $0x8] sm:$0xff]
  %10 = vst [vmem:[%s1] sm:$0xff] %v8
  %11 = vst [vmem:[%s1 + $0x8] sm:$0xff] %v9
  // Predicated region
  $region6: #{view_forward.1} parent=0 // pred_check
    _
  $region7: #{view_forward.1} parent=0 // pred_check_branch
    %13 = sbr.rel (0) target = $region9
  $region8: #{view_forward.1} parent=0 // pred_region
    _
  $region9: #{view_forward.1} parent=0 // pred_fallthru
    _
  // Predicated region
  $region10: #{view_forward.1} parent=0 // pred_check
    _
  $region11: #{view_forward.1} parent=0 // pred_check_branch
    %15 = sbr.rel (0) target = $region13
  $region12: #{view_forward.1} parent=0 // pred_region
    _
  $region13: #{view_forward.1} parent=0 // pred_fallthru
    _

</llo_original>
